<compile_context>
chip_gen: v5e
topology: v5e:2x2
jax: 0.10.0
libtpu: 0.0.40
codegen_flags: <defaults>
</compile_context>

<pallas_src>
import jax
import jax.numpy as jnp
from jax.experimental import pallas as pl
from jax.experimental.pallas import tpu as pltpu


def _round_up(n, m):
    return (n + m - 1) // m * m


def _classifier_kernel(xt_ref, w_ref, b_ref, o_ref):
    # xt_ref: (F, TB)  input tile, features on sublanes, batch on lanes
    # w_ref : (F, 1)   f32 weight column (VMEM)
    # b_ref : (1, 1)   f32 bias (SMEM scalar)
    # o_ref : (1, TB)  f32 output tile (lane-dense)
    x = xt_ref[...].astype(jnp.float32)            # upcast in-kernel (VPU)
    w = w_ref[...]                                 # (F, 1) broadcast over lanes
    b = b_ref[0, 0]                                # scalar from SMEM
    # VPU multiply + XLU sublane reduce; EUP handles the sigmoid (exp/recip).
    logits = jnp.sum(x * w, axis=0, keepdims=True) + b     # (1, TB)
    o_ref[...] = jax.nn.sigmoid(logits).astype(o_ref.dtype)


def deterministic_classifier(x, weight, bias, *, max_tile_b=2048):
    """sigmoid(x @ weight.T + bias) computed in a single Pallas TPU kernel.

    x: (B, F), weight: (1, F), bias: (1,). Returns (B, 1) float32.
    """
    B, F = x.shape
    assert weight.shape == (1, F)

    w_col = weight.astype(jnp.float32).reshape(F, 1)   # (F, 1)
    b2 = bias.astype(jnp.float32).reshape(1, 1)        # (1, 1) -> SMEM

    # Batch tile: multiple of 128 lanes, capped (keeps VMEM tiny: F=8 rows).
    tb = min(max_tile_b, _round_up(B, 128))
    Bp = _round_up(B, tb)

    # Layout plumbing: batch onto the lane axis, pad to the tile boundary.
    # Keep the input dtype (no wrapper upcast -> no extra HBM traffic).
    xt = jnp.pad(x.T, ((0, 0), (0, Bp - B)))           # (F, Bp)

    out = pl.pallas_call(
        _classifier_kernel,
        out_shape=jax.ShapeDtypeStruct((1, Bp), jnp.float32),
        grid=(Bp // tb,),
        in_specs=[
            pl.BlockSpec((F, tb), lambda i: (0, i)),            # x tile
            pl.BlockSpec((F, 1), lambda i: (0, 0)),             # weight
            pl.BlockSpec(memory_space=pltpu.MemorySpace.SMEM),  # bias scalar
        ],
        out_specs=pl.BlockSpec((1, tb), lambda i: (0, i)),
        compiler_params=pltpu.CompilerParams(
            dimension_semantics=("parallel",),
        ),
    )(xt, w_col, b2)

    return out[0, :B].reshape(B, 1)


if __name__ == "__main__":
    # Deterministic parameters, exactly as hard-coded in the PyTorch module
    # (module is constructed with n_features_selected=6 but the weight data
    #  overrides it to 8 input features).
    weight = jnp.array(
        [[1.1164, -0.3639, 0.1513, -0.3514, -0.7906, -0.0915, 0.2352, 2.244]],
        dtype=jnp.float32,
    )
    bias = jnp.array([0.5817], dtype=jnp.float32)

    key = jax.random.PRNGKey(0)
    x = jax.random.normal(key, (8, 8), dtype=jnp.float32)  # batch=8, features=8

    out = deterministic_classifier(x, weight, bias)
    out = jax.block_until_ready(out)

    # Pure-JAX reference check
    ref = jax.nn.sigmoid(x @ weight.T + bias)
    assert out.shape == (8, 1)
    assert jnp.allclose(out, ref, atol=1e-5, rtol=1e-5)

    print("KERNEL_OK")
</pallas_src>

<mosaic_0001>
module attributes {stable_mosaic.version = 11 : i64} {
  func.func @_classifier_kernel(%arg0: i32, %arg1: memref<8x128xf32, #tpu.memory_space<vmem>>, %arg2: memref<8x1xf32, #tpu.memory_space<vmem>>, %arg3: memref<1x1xf32, #tpu.memory_space<smem>>, %arg4: memref<1x128xf32, #tpu.memory_space<vmem>>) attributes {dimension_semantics = [#tpu.dimension_semantics<parallel>], iteration_bounds = array<i64: 1>, scalar_prefetch = 0 : i64, scratch_operands = 0 : i64, tpu.core_type = #tpu.core_type<tc>, window_params = [{transform_indices = @transform_0, window_bounds = array<i64: 8, 128>}, {pipeline_mode = #tpu.pipeline_mode<synchronous>, transform_indices = @transform_1, window_bounds = array<i64: 8, 1>}, {transform_indices = @transform_2, window_bounds = array<i64: 1, 1>}, {transform_indices = @transform_3, window_bounds = array<i64: 1, 128>}]} {
    %c0 = arith.constant 0 : index
    %c0_0 = arith.constant 0 : index
    %0 = vector.load %arg1[%c0, %c0_0] : memref<8x128xf32, #tpu.memory_space<vmem>>, vector<8x128xf32>
    %c0_1 = arith.constant 0 : index
    %c0_2 = arith.constant 0 : index
    %1 = vector.load %arg2[%c0_1, %c0_2] : memref<8x1xf32, #tpu.memory_space<vmem>>, vector<8x1xf32>
    %c0_3 = arith.constant 0 : index
    %c0_4 = arith.constant 0 : index
    %2 = memref.load %arg3[%c0_3, %c0_4] : memref<1x1xf32, #tpu.memory_space<smem>>
    %3 = vector.broadcast %1 : vector<8x1xf32> to vector<8x128xf32>
    %4 = arith.mulf %0, %3 : vector<8x128xf32>
    %cst = arith.constant dense<0.000000e+00> : vector<128xf32>
    %5 = vector.multi_reduction <add>, %4, %cst [0] : vector<8x128xf32> to vector<128xf32>
    %6 = vector.shape_cast %5 : vector<128xf32> to vector<1x128xf32>
    %7 = vector.broadcast %2 : f32 to vector<1x128xf32>
    %8 = arith.addf %6, %7 : vector<1x128xf32>
    %9 = arith.negf %8 : vector<1x128xf32>
    %10 = math.exp %9 : vector<1x128xf32>
    %cst_5 = arith.constant 1.000000e+00 : f32
    %11 = vector.broadcast %cst_5 : f32 to vector<1x128xf32>
    %12 = arith.addf %11, %10 : vector<1x128xf32>
    %13 = arith.divf %11, %12 : vector<1x128xf32>
    %c0_6 = arith.constant 0 : index
    %c0_7 = arith.constant 0 : index
    %14 = vector.load %arg4[%c0_6, %c0_7] : memref<1x128xf32, #tpu.memory_space<vmem>>, vector<1x128xf32>
    tpu.vector_store %arg4[%c0_6, %c0_7], %13 {strides = array<i32>} : memref<1x128xf32, #tpu.memory_space<vmem>>, vector<1x128xf32>,
    return
  }
  func.func @transform_0(%arg0: i32) -> (i32, i32) {
    %c0_i32 = arith.constant 0 : i32
    %c0_i32_0 = arith.constant 0 : i32
    return %c0_i32, %arg0 : i32, i32
  }
  func.func @transform_1(%arg0: i32) -> (i32, i32) {
    %c0_i32 = arith.constant 0 : i32
    %c0_i32_0 = arith.constant 0 : i32
    %c0_i32_1 = arith.constant 0 : i32
    return %c0_i32, %c0_i32_0 : i32, i32
  }
  func.func @transform_2(%arg0: i32) -> (i32, i32) {
    %c0_i32 = arith.constant 0 : i32
    %c0_i32_0 = arith.constant 0 : i32
    %c0_i32_1 = arith.constant 0 : i32
    return %c0_i32, %c0_i32_0 : i32, i32
  }
  func.func @transform_3(%arg0: i32) -> (i32, i32) {
    %c0_i32 = arith.constant 0 : i32
    %c0_i32_0 = arith.constant 0 : i32
    return %c0_i32, %arg0 : i32, i32
  }
}

</mosaic_0001>

<llo_original>
// kernel: tpu_custom_call.1
$region0: #{tpu_custom_call.1}
  #allocation0 [shape = 'u32[]', space=smem, size = 0x4, offset = 0x4, fixed_abs, tag = 'smem constant byte address 0x4 - core index']
  #allocation1 [shape = 'u32[72,128]{1,0:T(1,128)}', space=vmem, size = 0x9000, scoped, tag = 'internal scratch']
  #allocation2 [shape = 'f32[1,1]{1,0:T(1,128)S(6)}', space=smem, size = 0x200, scoped, tag = 'scoped memory for tpu_custom_call.1']
  %s0 = inlined_call_operand.vmem [shape: f32[8,128], index: 0, kind: input, shape index: {}]
  %s1 = inlined_call_operand.vmem [shape: f32[8,1], index: 1, kind: input, shape index: {}]
  %s2 = inlined_call_operand.<no memory space> [shape: f32[1,1], index: 2, kind: input, shape index: {}]
  %s3 = inlined_call_operand.hbm [shape: f32[1,128], index: 3, kind: output, shape index: {}]
  %s4 = sld [smem:[#allocation0]]
  $region22: #{tpu_custom_call.1} parent=0
    _
  %s6 = ssub.s32 1, %s4
  %s7 = scalar_select 0, %s6, %s4
  %8 = sst [smem:[#allocation2]] %s2
  $region1: #{tpu_custom_call.1} parent=0
    #allocation3 [shape = 'u8[512]{0}', space=vmem, size = 0x400, scoped, tag = 'output window, operand 0, single buffered']
    #allocation4 [shape = 's32[1]{0}', space=sflag, size = 0x4, scoped, tag = 'scoped memory for tpu_custom_call.1']
    %9 = vsyncpa [#allocation4], 0
    // Predicated region
    $region2: #{tpu_custom_call.1} parent=1 // pred_check
      _
    $region3: #{tpu_custom_call.1} parent=1 // pred_check_branch
      %11 = sbr.rel (0) target = $region5
    $region4: #{tpu_custom_call.1} parent=1 // pred_region
      _
    $region5: #{tpu_custom_call.1} parent=1 // pred_fallthru
      _
    // Predicated region
    $region6: #{tpu_custom_call.1} parent=1 // pred_check
      _
    $region7: #{tpu_custom_call.1} parent=1 // pred_check_branch
      %13 = sbr.rel (0) target = $region9
    $region8: #{tpu_custom_call.1} parent=1 // pred_region
      _
    $region9: #{tpu_custom_call.1} parent=1 // pred_fallthru
      _
    // Predicated region
    $region10: #{tpu_custom_call.1} parent=1 // pred_check
      _
    $region11: #{tpu_custom_call.1} parent=1 // pred_check_branch
      %15 = sbr.rel (0) target = $region13
    $region12: #{tpu_custom_call.1} parent=1 // pred_region
      _
    $region13: #{tpu_custom_call.1} parent=1 // pred_fallthru
      _
    %v16 = vld [vmem:[%s0] sm:$0xff]
    %v17 = vld [vmem:[%s1] sm:$0xff]
    %s18 = sld [smem:[#allocation2]]
    %20 = vset.pattern.permute.xlu0 0
    %21 = vperm.xlu0 %20, %v17
    %v22 = vpop.permute.xlu0 %21
    %v24 = vmul.f32 %v16, %v22
    %v25 = vrot.slane %v24, 4
    %v26 = vadd.f32 %v24, %v25
    %v27 = vrot.slane %v26, 2
    %v28 = vadd.f32 %v26, %v27
    %v29 = vrot.slane %v28, 1
    %v30 = vadd.f32 %v28, %v29
    %v31 = vstv %s18
    %v32 = vadd.f32 %v30, %v31
    %v33 = vxor.u32 %v32, 2147483648
    %v34 = vmul.f32 %v33, 1.442695
    %v35 = vpow.pop %v34
    %v36 = vadd.f32 %v35, 1.0
    %v37 = vrcp.pop %v36
    %v38 = vmul.f32 %v36, %v37
    %v39 = vsub.f32 1.0, %v38
    %v40 = vmul.f32 %v37, %v39
    %v41 = vadd.f32 %v37, %v40
    %vm42 = vweird.f32 %v36
    %vm43 = vweird.f32 %v37
    %vm44 = vmor %vm42, %vm43
    %v45 = vsel %vm44, %v37, %v41
    %v46 = vand.u32 2147483647, %v36
    %vm47 = vcmp.eq.f32.partialorder %v46, 8.507059e+37
    %v48 = vand.u32 %v36, 2147483648
    %v49 = vor.u32 1.1754944e-38, %v48
    %v50 = vsel %vm47, %v49, %v45
    %v51 = vmul.f32 1.0, %v50
    %52 = vst [vmem:[#allocation3] sm:$0x1] %v51
    // Predicated region
    $region14: #{tpu_custom_call.1} parent=1 // pred_check
      _
    $region15: #{tpu_custom_call.1} parent=1 // pred_check_branch
      %54 = sbr.rel (0) target = $region17
    $region16: #{tpu_custom_call.1} parent=1 // pred_region
      %56 = vsyncadd [#allocation4], 0
      %s58 = sshll.u32 [#allocation3], 4
      %s59 = int_to_ptr.vmem [resolvable:$true] %s58
      %s60 = sshll.u32 %s3, 4
      %s61 = int_to_ptr.hbm [resolvable:$true] %s60
      %63 = dma.vmem_to_hbm [thread:$0]  %s59, 16, %s61, [#allocation4]
    $region17: #{tpu_custom_call.1} parent=1 // pred_fallthru
      _
    // Predicated region
    $region18: #{tpu_custom_call.1} parent=1 // pred_check
      _
    $region19: #{tpu_custom_call.1} parent=1 // pred_check_branch
      %65 = sbr.rel (0) target = $region21
    $region20: #{tpu_custom_call.1} parent=1 // pred_region
      %67 = dma.done [#allocation4], 16
    $region21: #{tpu_custom_call.1} parent=1 // pred_fallthru
      _
    %68 = vsyncpa [#allocation4], 1

</llo_original>
